<compile_context>
chip_gen: v5e
topology: v5e:2x2
jax: 0.10.0
libtpu: 0.0.40
codegen_flags: <defaults>
</compile_context>

<pallas_src>
import functools
import math

import jax
import jax.numpy as jnp
from jax.experimental import pallas as pl
from jax.experimental.pallas import tpu as pltpu


def _round_up(x, m):
    return ((x + m - 1) // m) * m


# ---------------------------------------------------------------------------
# pass 1: global |z| statistics, partial sums kept in an (8, L) accumulator
# ---------------------------------------------------------------------------
def _stats_kernel(re_ref, im_ref, sum_ref, sumsq_ref):
    @pl.when(pl.program_id(0) == 0)
    def _():
        sum_ref[...] = jnp.zeros_like(sum_ref)
        sumsq_ref[...] = jnp.zeros_like(sumsq_ref)

    re = re_ref[...].astype(jnp.float32)
    im = im_ref[...].astype(jnp.float32)
    mod2 = re * re + im * im          # |z|^2  (VPU)
    mod = jnp.sqrt(mod2)              # |z|    (EUP slot, effectively free)

    rt, lw = mod.shape
    # (rt, lw) -> (rt//8, 8, lw) only regroups (8,128)-tiled vregs, so the
    # axis-0 sum is plain VPU vreg adds (no per-step cross-lane XLU work).
    sum_ref[...] += jnp.sum(mod.reshape(rt // 8, 8, lw), axis=0)
    sumsq_ref[...] += jnp.sum(mod2.reshape(rt // 8, 8, lw), axis=0)


# ---------------------------------------------------------------------------
# pass 2: out = z * scale   (scale is a precomputed scalar living in SMEM)
# ---------------------------------------------------------------------------
def _scale_kernel(scale_ref, re_ref, im_ref, ore_ref, oim_ref):
    s = scale_ref[0]
    ore_ref[...] = (re_ref[...].astype(jnp.float32) * s).astype(ore_ref.dtype)
    oim_ref[...] = (im_ref[...].astype(jnp.float32) * s).astype(oim_ref.dtype)


# ---------------------------------------------------------------------------
# fused single-pass kernel for inputs that fit comfortably in VMEM
# ---------------------------------------------------------------------------
def _fused_kernel(n, eps, re_ref, im_ref, ore_ref, oim_ref):
    re = re_ref[...].astype(jnp.float32)
    im = im_ref[...].astype(jnp.float32)
    mod2 = re * re + im * im
    mod = jnp.sqrt(mod2)
    total = jnp.sum(mod)
    totalsq = jnp.sum(mod2)
    mean = total / n
    denom = (n - 1.0) if n > 1.0 else 1.0      # torch.var unbiased default
    var = (totalsq - n * mean * mean) / denom
    scale = 2.0 / (mean * jnp.sqrt(var + eps))
    ore_ref[...] = (re * scale).astype(ore_ref.dtype)
    oim_ref[...] = (im * scale).astype(oim_ref.dtype)


def complex_layer_norm(z_re, z_im, *, eps=1e-6, lane_width=512, tile_rows=256,
                       fused_vmem_bytes=12 * 1024 * 1024):
    """Pallas implementation of ComplexLayerNorm.forward.

    z_re, z_im: float arrays of identical shape holding the real / imaginary
    parts of z.  Returns (out_re, out_im) of the same shape and dtype.
    """
    assert z_re.shape == z_im.shape
    orig_shape = z_re.shape
    out_dtype = z_re.dtype
    n_true = math.prod(orig_shape)
    n = float(n_true)

    re_flat = z_re.reshape(-1)
    im_flat = z_im.reshape(-1)

    fused_pad = _round_up(max(n_true, 1), 8 * lane_width)
    if 4 * fused_pad * 4 <= fused_vmem_bytes:
        # ---- fused single pass: read re/im from HBM exactly once -----------
        rows = fused_pad // lane_width
        re2 = jnp.pad(re_flat, (0, fused_pad - n_true)).reshape(rows, lane_width)
        im2 = jnp.pad(im_flat, (0, fused_pad - n_true)).reshape(rows, lane_width)
        out_re2, out_im2 = pl.pallas_call(
            functools.partial(_fused_kernel, n, float(eps)),
            out_shape=(
                jax.ShapeDtypeStruct((rows, lane_width), out_dtype),
                jax.ShapeDtypeStruct((rows, lane_width), out_dtype),
            ),
            grid=(1,),
            in_specs=[
                pl.BlockSpec((rows, lane_width), lambda i: (0, 0)),
                pl.BlockSpec((rows, lane_width), lambda i: (0, 0)),
            ],
            out_specs=(
                pl.BlockSpec((rows, lane_width), lambda i: (0, 0)),
                pl.BlockSpec((rows, lane_width), lambda i: (0, 0)),
            ),
            compiler_params=pltpu.CompilerParams(
                dimension_semantics=("arbitrary",)),
        )(re2, im2)
    else:
        # ---- tiled two-pass path --------------------------------------------
        pad_n = _round_up(n_true, tile_rows * lane_width)
        rows = pad_n // lane_width
        n_tiles = rows // tile_rows
        re2 = jnp.pad(re_flat, (0, pad_n - n_true)).reshape(rows, lane_width)
        im2 = jnp.pad(im_flat, (0, pad_n - n_true)).reshape(rows, lane_width)

        part_sum, part_sq = pl.pallas_call(
            _stats_kernel,
            out_shape=(
                jax.ShapeDtypeStruct((8, lane_width), jnp.float32),
                jax.ShapeDtypeStruct((8, lane_width), jnp.float32),
            ),
            grid=(n_tiles,),
            in_specs=[
                pl.BlockSpec((tile_rows, lane_width), lambda i: (i, 0)),
                pl.BlockSpec((tile_rows, lane_width), lambda i: (i, 0)),
            ],
            out_specs=(
                pl.BlockSpec((8, lane_width), lambda i: (0, 0)),
                pl.BlockSpec((8, lane_width), lambda i: (0, 0)),
            ),
            compiler_params=pltpu.CompilerParams(
                dimension_semantics=("arbitrary",)),
        )(re2, im2)

        # Final reduce + scale computed ONCE (zero padding contributed nothing
        # to either sum, so only the true element count enters here).
        # TODO(synk): f32 sum-of-squares variance can lose precision for very
        # large N; a Welford-style per-tile merge would be more robust.
        total = jnp.sum(part_sum)
        totalsq = jnp.sum(part_sq)
        mean = total / n
        denom = (n - 1.0) if n_true > 1 else 1.0
        var = (totalsq - n * mean * mean) / denom
        scale_arr = (2.0 / (mean * jnp.sqrt(var + eps))).astype(
            jnp.float32).reshape(1)

        out_re2, out_im2 = pl.pallas_call(
            _scale_kernel,
            out_shape=(
                jax.ShapeDtypeStruct((rows, lane_width), out_dtype),
                jax.ShapeDtypeStruct((rows, lane_width), out_dtype),
            ),
            grid=(n_tiles,),
            in_specs=[
                pl.BlockSpec(memory_space=pltpu.MemorySpace.SMEM),
                pl.BlockSpec((tile_rows, lane_width), lambda i: (i, 0)),
                pl.BlockSpec((tile_rows, lane_width), lambda i: (i, 0)),
            ],
            out_specs=(
                pl.BlockSpec((tile_rows, lane_width), lambda i: (i, 0)),
                pl.BlockSpec((tile_rows, lane_width), lambda i: (i, 0)),
            ),
            compiler_params=pltpu.CompilerParams(
                dimension_semantics=("parallel",)),
        )(scale_arr, re2, im2)

    out_re = out_re2.reshape(-1)[:n_true].reshape(orig_shape)
    out_im = out_im2.reshape(-1)[:n_true].reshape(orig_shape)
    return out_re, out_im


if __name__ == "__main__":
    # ComplexLayerNorm(target_dim) has no learnable parameters; target_dim is
    # stored but unused in forward, so there is nothing to initialize.
    B, S, H = 2, 8, 32  # batch=2, seq=8, hidden=32 (target_dim = H)
    eps = 1e-6

    key = jax.random.PRNGKey(0)
    k_re, k_im = jax.random.split(key)
    z_re = jax.random.normal(k_re, (B, S, H), dtype=jnp.float32)
    z_im = jax.random.normal(k_im, (B, S, H), dtype=jnp.float32)

    # Pure-JAX reference following the literal PyTorch path (abs/angle/polar).
    mod = jnp.sqrt(z_re * z_re + z_im * z_im)
    arg = jnp.arctan2(z_im, z_re)
    mean = jnp.mean(mod)
    var = jnp.var(mod, ddof=1)  # torch.var default: unbiased
    normed_mod = 2.0 * (mod / mean) / jnp.sqrt(var + eps)
    ref_re = normed_mod * jnp.cos(arg)
    ref_im = normed_mod * jnp.sin(arg)

    # fused single-pass path (default for small shapes)
    out_re, out_im = complex_layer_norm(z_re, z_im, eps=eps)
    out_re = jax.block_until_ready(out_re)
    out_im = jax.block_until_ready(out_im)
    assert jnp.allclose(out_re, ref_re, atol=2e-3, rtol=2e-3), "fused real mismatch"
    assert jnp.allclose(out_im, ref_im, atol=2e-3, rtol=2e-3), "fused imag mismatch"

    # also exercise the tiled two-pass path (forced by disabling the fused one)
    t_re, t_im = complex_layer_norm(z_re, z_im, eps=eps, fused_vmem_bytes=0)
    t_re = jax.block_until_ready(t_re)
    t_im = jax.block_until_ready(t_im)
    assert jnp.allclose(t_re, ref_re, atol=2e-3, rtol=2e-3), "tiled real mismatch"
    assert jnp.allclose(t_im, ref_im, atol=2e-3, rtol=2e-3), "tiled imag mismatch"

    print("KERNEL_OK")
</pallas_src>

<mosaic_0001>
module attributes {stable_mosaic.version = 11 : i64} {
  func.func @_fused_kernel(%arg0: i32, %arg1: memref<8x512xf32, #tpu.memory_space<vmem>>, %arg2: memref<8x512xf32, #tpu.memory_space<vmem>>, %arg3: memref<8x512xf32, #tpu.memory_space<vmem>>, %arg4: memref<8x512xf32, #tpu.memory_space<vmem>>) attributes {dimension_semantics = [#tpu.dimension_semantics<arbitrary>], iteration_bounds = array<i64: 1>, scalar_prefetch = 0 : i64, scratch_operands = 0 : i64, tpu.core_type = #tpu.core_type<tc>, window_params = [{pipeline_mode = #tpu.pipeline_mode<synchronous>, transform_indices = @transform_0, window_bounds = array<i64: 8, 512>}, {pipeline_mode = #tpu.pipeline_mode<synchronous>, transform_indices = @transform_1, window_bounds = array<i64: 8, 512>}, {pipeline_mode = #tpu.pipeline_mode<synchronous>, transform_indices = @transform_2, window_bounds = array<i64: 8, 512>}, {pipeline_mode = #tpu.pipeline_mode<synchronous>, transform_indices = @transform_3, window_bounds = array<i64: 8, 512>}]} {
    %c0 = arith.constant 0 : index
    %c0_0 = arith.constant 0 : index
    %0 = vector.load %arg1[%c0, %c0_0] : memref<8x512xf32, #tpu.memory_space<vmem>>, vector<8x512xf32>
    %c0_1 = arith.constant 0 : index
    %c0_2 = arith.constant 0 : index
    %1 = vector.load %arg2[%c0_1, %c0_2] : memref<8x512xf32, #tpu.memory_space<vmem>>, vector<8x512xf32>
    %2 = arith.mulf %0, %0 : vector<8x512xf32>
    %3 = arith.mulf %1, %1 : vector<8x512xf32>
    %4 = arith.addf %2, %3 : vector<8x512xf32>
    %5 = math.sqrt %4 : vector<8x512xf32>
    %6 = vector.shape_cast %5 : vector<8x512xf32> to vector<1x8x512xf32>
    %cst = arith.constant dense<0.000000e+00> : vector<1xf32>
    %7 = vector.multi_reduction <add>, %6, %cst [1, 2] : vector<1x8x512xf32> to vector<1xf32>
    %8 = vector.shape_cast %7 : vector<1xf32> to vector<1x1x1xf32>
    %9 = vector.extract %8[0, 0, 0] : f32 from vector<1x1x1xf32>
    %10 = vector.shape_cast %4 : vector<8x512xf32> to vector<1x8x512xf32>
    %cst_3 = arith.constant dense<0.000000e+00> : vector<1xf32>
    %11 = vector.multi_reduction <add>, %10, %cst_3 [1, 2] : vector<1x8x512xf32> to vector<1xf32>
    %12 = vector.shape_cast %11 : vector<1xf32> to vector<1x1x1xf32>
    %13 = vector.extract %12[0, 0, 0] : f32 from vector<1x1x1xf32>
    %cst_4 = arith.constant 5.120000e+02 : f32
    %14 = arith.divf %9, %cst_4 : f32
    %cst_5 = arith.constant 5.120000e+02 : f32
    %15 = arith.mulf %cst_5, %14 : f32
    %16 = arith.mulf %15, %14 : f32
    %17 = arith.subf %13, %16 : f32
    %cst_6 = arith.constant 5.110000e+02 : f32
    %18 = arith.divf %17, %cst_6 : f32
    %cst_7 = arith.constant 9.99999997E-7 : f32
    %19 = arith.addf %18, %cst_7 : f32
    %20 = math.sqrt %19 : f32
    %21 = arith.mulf %14, %20 : f32
    %cst_8 = arith.constant 2.000000e+00 : f32
    %22 = arith.divf %cst_8, %21 : f32
    %23 = vector.broadcast %22 : f32 to vector<8x512xf32>
    %24 = arith.mulf %0, %23 : vector<8x512xf32>
    %c0_9 = arith.constant 0 : index
    %c0_10 = arith.constant 0 : index
    %25 = vector.load %arg3[%c0_9, %c0_10] : memref<8x512xf32, #tpu.memory_space<vmem>>, vector<8x512xf32>
    tpu.vector_store %arg3[%c0_9, %c0_10], %24 {strides = array<i32>} : memref<8x512xf32, #tpu.memory_space<vmem>>, vector<8x512xf32>,
    %26 = vector.broadcast %22 : f32 to vector<8x512xf32>
    %27 = arith.mulf %1, %26 : vector<8x512xf32>
    %c0_11 = arith.constant 0 : index
    %c0_12 = arith.constant 0 : index
    %28 = vector.load %arg4[%c0_11, %c0_12] : memref<8x512xf32, #tpu.memory_space<vmem>>, vector<8x512xf32>
    tpu.vector_store %arg4[%c0_11, %c0_12], %27 {strides = array<i32>} : memref<8x512xf32, #tpu.memory_space<vmem>>, vector<8x512xf32>,
    return
  }
  func.func @transform_0(%arg0: i32) -> (i32, i32) {
    %c0_i32 = arith.constant 0 : i32
    %c0_i32_0 = arith.constant 0 : i32
    %c0_i32_1 = arith.constant 0 : i32
    return %c0_i32, %c0_i32_0 : i32, i32
  }
  func.func @transform_1(%arg0: i32) -> (i32, i32) {
    %c0_i32 = arith.constant 0 : i32
    %c0_i32_0 = arith.constant 0 : i32
    %c0_i32_1 = arith.constant 0 : i32
    return %c0_i32, %c0_i32_0 : i32, i32
  }
  func.func @transform_2(%arg0: i32) -> (i32, i32) {
    %c0_i32 = arith.constant 0 : i32
    %c0_i32_0 = arith.constant 0 : i32
    %c0_i32_1 = arith.constant 0 : i32
    return %c0_i32, %c0_i32_0 : i32, i32
  }
  func.func @transform_3(%arg0: i32) -> (i32, i32) {
    %c0_i32 = arith.constant 0 : i32
    %c0_i32_0 = arith.constant 0 : i32
    %c0_i32_1 = arith.constant 0 : i32
    return %c0_i32, %c0_i32_0 : i32, i32
  }
}

</mosaic_0001>

<llo_original>
// kernel: tpu_custom_call.1
$region0: #{tpu_custom_call.1}
  #allocation0 [shape = 'u32[]', space=smem, size = 0x4, offset = 0x4, fixed_abs, tag = 'smem constant byte address 0x4 - core index']
  #allocation1 [shape = 'u32[72,128]{1,0:T(1,128)}', space=vmem, size = 0x9000, scoped, tag = 'internal scratch']
  %s0 = inlined_call_operand.hbm [shape: f32[8,512], index: 0, kind: input, shape index: {}]
  %s1 = inlined_call_operand.hbm [shape: f32[8,512], index: 1, kind: input, shape index: {}]
  %s2 = inlined_call_operand.hbm [shape: f32[8,512], index: 2, kind: output, shape index: {0}]
  %s3 = inlined_call_operand.hbm [shape: f32[8,512], index: 3, kind: output, shape index: {1}]
  %4 = xla_tuple %s2, %s3
  %s5 = sld [smem:[#allocation0]]
  $region34: #{tpu_custom_call.1} parent=0
    _
  %s7 = ssub.s32 1, %s5
  %s8 = scalar_select 0, %s7, %s5
  $region1: #{tpu_custom_call.1} parent=0
    #allocation2 [shape = 'u8[16384]{0}', space=vmem, size = 0x4000, scoped, tag = 'input window, operand 0, single buffered']
    #allocation3 [shape = 's32[1]{0}', space=sflag, size = 0x4, scoped, tag = 'scoped memory for tpu_custom_call.1']
    #allocation4 [shape = 's32[1]{0}', space=sflag, size = 0x4, scoped, tag = 'scoped memory for tpu_custom_call.1']
    #allocation5 [shape = 'u8[16384]{0}', space=vmem, size = 0x4000, scoped, tag = 'input window, operand 1, single buffered']
    #allocation6 [shape = 's32[1]{0}', space=sflag, size = 0x4, scoped, tag = 'scoped memory for tpu_custom_call.1']
    #allocation7 [shape = 'u8[16384]{0}', space=vmem, size = 0x4000, scoped, tag = 'output window, operand 0, single buffered']
    #allocation8 [shape = 'u8[16384]{0}', space=vmem, size = 0x4000, scoped, tag = 'output window, operand 1, single buffered']
    #allocation9 [shape = 's32[1]{0}', space=sflag, size = 0x4, scoped, tag = 'scoped memory for tpu_custom_call.1']
    %9 = vsyncpa [#allocation3], 0
    %10 = vsyncpa [#allocation6], 0
    %11 = vsyncpa [#allocation4], 0
    %12 = vsyncpa [#allocation9], 0
    // Predicated region
    $region2: #{tpu_custom_call.1} parent=1 // pred_check
      _
    $region3: #{tpu_custom_call.1} parent=1 // pred_check_branch
      %14 = sbr.rel (0) target = $region5
    $region4: #{tpu_custom_call.1} parent=1 // pred_region
      %16 = vsyncadd [#allocation3], 0
      %s18 = sshll.u32 %s0, 4
      %s19 = int_to_ptr.hbm [resolvable:$true] %s18
      %s20 = sshll.u32 [#allocation2], 4
      %s21 = int_to_ptr.vmem [resolvable:$true] %s20
      %23 = dma.hbm_to_vmem [thread:$0]  %s19, 512, %s21, [#allocation3]
    $region5: #{tpu_custom_call.1} parent=1 // pred_fallthru
      _
    // Predicated region
    $region6: #{tpu_custom_call.1} parent=1 // pred_check
      _
    $region7: #{tpu_custom_call.1} parent=1 // pred_check_branch
      %25 = sbr.rel (0) target = $region9
    $region8: #{tpu_custom_call.1} parent=1 // pred_region
      %27 = vsyncadd [#allocation6], 0
      %s29 = sshll.u32 %s1, 4
      %s30 = int_to_ptr.hbm [resolvable:$true] %s29
      %s31 = sshll.u32 [#allocation5], 4
      %s32 = int_to_ptr.vmem [resolvable:$true] %s31
      %34 = dma.hbm_to_vmem [thread:$0]  %s30, 512, %s32, [#allocation6]
    $region9: #{tpu_custom_call.1} parent=1 // pred_fallthru
      _
    // Predicated region
    $region10: #{tpu_custom_call.1} parent=1 // pred_check
      _
    $region11: #{tpu_custom_call.1} parent=1 // pred_check_branch
      %36 = sbr.rel (0) target = $region13
    $region12: #{tpu_custom_call.1} parent=1 // pred_region
      %38 = dma.done [#allocation3], 512
    $region13: #{tpu_custom_call.1} parent=1 // pred_fallthru
      _
    // Predicated region
    $region14: #{tpu_custom_call.1} parent=1 // pred_check
      _
    $region15: #{tpu_custom_call.1} parent=1 // pred_check_branch
      %40 = sbr.rel (0) target = $region17
    $region16: #{tpu_custom_call.1} parent=1 // pred_region
      %42 = dma.done [#allocation6], 512
    $region17: #{tpu_custom_call.1} parent=1 // pred_fallthru
      _
    %v43 = vld [vmem:[#allocation2] sm:$0xff]
    %v44 = vld [vmem:[#allocation2 + $0x8] sm:$0xff]
    %v45 = vld [vmem:[#allocation2 + $0x10] sm:$0xff]
    %v46 = vld [vmem:[#allocation2 + $0x18] sm:$0xff]
    %v47 = vld [vmem:[#allocation5] sm:$0xff]
    %v48 = vld [vmem:[#allocation5 + $0x8] sm:$0xff]
    %v49 = vld [vmem:[#allocation5 + $0x10] sm:$0xff]
    %v50 = vld [vmem:[#allocation5 + $0x18] sm:$0xff]
    %v51 = vmul.f32 %v43, %v43
    %v52 = vmul.f32 %v44, %v44
    %v53 = vmul.f32 %v45, %v45
    %v54 = vmul.f32 %v46, %v46
    %v55 = vmul.f32 %v47, %v47
    %v56 = vmul.f32 %v48, %v48
    %v57 = vmul.f32 %v49, %v49
    %v58 = vmul.f32 %v50, %v50
    %v59 = vadd.f32 %v51, %v55
    %v60 = vadd.f32 %v52, %v56
    %v61 = vadd.f32 %v53, %v57
    %v62 = vadd.f32 %v54, %v58
    %v63 = vrsqrt.pop %v59
    %v64 = vmul.f32 %v63, %v59
    %v65 = vmul.f32 %v64, %v63
    %v66 = vmul.f32 0.5, %v65
    %v67 = vsub.f32 1.5, %v66
    %v68 = vmul.f32 %v63, %v67
    %v69 = vmul.f32 %v59, %v68
    %vm70 = vcmp.eq.f32.partialorder %v59, inf
    %v71 = vsel %vm70, %v59, %v69
    %vm72 = vcmp.eq.f32.partialorder %v59, 0.0
    %v73 = vand.u32 %v59, 2147483648
    %v74 = vsel %vm72, %v73, %v71
    %v75 = vrsqrt.pop %v60
    %v76 = vmul.f32 %v75, %v60
    %v77 = vmul.f32 %v76, %v75
    %v78 = vmul.f32 0.5, %v77
    %v79 = vsub.f32 1.5, %v78
    %v80 = vmul.f32 %v75, %v79
    %v81 = vmul.f32 %v60, %v80
    %vm82 = vcmp.eq.f32.partialorder %v60, inf
    %v83 = vsel %vm82, %v60, %v81
    %vm84 = vcmp.eq.f32.partialorder %v60, 0.0
    %v85 = vand.u32 %v60, 2147483648
    %v86 = vsel %vm84, %v85, %v83
    %v87 = vrsqrt.pop %v61
    %v88 = vmul.f32 %v87, %v61
    %v89 = vmul.f32 %v88, %v87
    %v90 = vmul.f32 0.5, %v89
    %v91 = vsub.f32 1.5, %v90
    %v92 = vmul.f32 %v87, %v91
    %v93 = vmul.f32 %v61, %v92
    %vm94 = vcmp.eq.f32.partialorder %v61, inf
    %v95 = vsel %vm94, %v61, %v93
    %vm96 = vcmp.eq.f32.partialorder %v61, 0.0
    %v97 = vand.u32 %v61, 2147483648
    %v98 = vsel %vm96, %v97, %v95
    %v99 = vrsqrt.pop %v62
    %v100 = vmul.f32 %v99, %v62
    %v101 = vmul.f32 %v100, %v99
    %v102 = vmul.f32 0.5, %v101
    %v103 = vsub.f32 1.5, %v102
    %v104 = vmul.f32 %v99, %v103
    %v105 = vmul.f32 %v62, %v104
    %vm106 = vcmp.eq.f32.partialorder %v62, inf
    %v107 = vsel %vm106, %v62, %v105
    %vm108 = vcmp.eq.f32.partialorder %v62, 0.0
    %v109 = vand.u32 %v62, 2147483648
    %v110 = vsel %vm108, %v109, %v107
    %v111 = vadd.f32 %v74, %v86
    %v112 = vadd.f32 %v111, %v98
    %v113 = vadd.f32 %v112, %v110
    %114 = vadd.xlane.f32.xlu0 %v113
    %v115 = vpop.xlane.xlu0 %114
    %v116 = vrot.slane %v115, 4
    %v117 = vadd.f32 %v115, %v116
    %v118 = vrot.slane %v117, 2
    %v119 = vadd.f32 %v117, %v118
    %v120 = vrot.slane %v119, 1
    %v121 = vadd.f32 %v119, %v120
    %s122 = vtos %v121
    %v123 = vadd.f32 %v59, %v60
    %v124 = vadd.f32 %v123, %v61
    %v125 = vadd.f32 %v124, %v62
    %126 = vadd.xlane.f32.xlu0 %v125
    %v127 = vpop.xlane.xlu0 %126
    %v128 = vrot.slane %v127, 4
    %v129 = vadd.f32 %v127, %v128
    %v130 = vrot.slane %v129, 2
    %v131 = vadd.f32 %v129, %v130
    %v132 = vrot.slane %v131, 1
    %v133 = vadd.f32 %v131, %v132
    %s134 = vtos %v133
    %v135 = vrcp.pop 512.0
    %v136 = vmul.f32 512.0, %v135
    %v137 = vsub.f32 1.0, %v136
    %v138 = vmul.f32 %v135, %v137
    %v139 = vadd.f32 %v135, %v138
    %vm140 = vweird.f32 %v135
    %v141 = vsel %vm140, %v135, %v139
    %s142 = vtos %v141
    %s143 = smul.f32 %s122, %s142
    %s144 = smul.f32 %s143, 512.0
    %s145 = smul.f32 %s144, %s143
    %s146 = ssub.f32 %s134, %s145
    %v147 = vrcp.pop 511.0
    %v148 = vmul.f32 511.0, %v147
    %v149 = vsub.f32 1.0, %v148
    %v150 = vmul.f32 %v147, %v149
    %v151 = vadd.f32 %v147, %v150
    %vm152 = vweird.f32 %v147
    %v153 = vsel %vm152, %v147, %v151
    %s154 = vtos %v153
    %s155 = smul.f32 %s146, %s154
    %s156 = sadd.f32 %s155, 1e-06
    %v157 = vstv %s156
    %v158 = vrsqrt.pop %v157
    %v159 = vmul.f32 %v158, %v157
    %v160 = vmul.f32 %v159, %v158
    %v161 = vmul.f32 0.5, %v160
    %v162 = vsub.f32 1.5, %v161
    %v163 = vmul.f32 %v158, %v162
    %v164 = vmul.f32 %v157, %v163
    %vm165 = vcmp.eq.f32.partialorder %v157, inf
    %v166 = vsel %vm165, %v157, %v164
    %vm167 = vcmp.eq.f32.partialorder %v157, 0.0
    %v168 = vand.u32 %v157, 2147483648
    %v169 = vsel %vm167, %v168, %v166
    %s170 = vtos %v169
    %s171 = smul.f32 %s143, %s170
    %v172 = vstv %s171
    %v173 = vrcp.pop %v172
    %v174 = vmul.f32 %v172, %v173
    %v175 = vsub.f32 1.0, %v174
    %v176 = vmul.f32 %v173, %v175
    %v177 = vadd.f32 %v173, %v176
    %vm178 = vweird.f32 %v172
    %vm179 = vweird.f32 %v173
    %vm180 = vmor %vm178, %vm179
    %v181 = vsel %vm180, %v173, %v177
    %v182 = vand.u32 2147483647, %v172
    %vm183 = vcmp.eq.f32.partialorder %v182, 8.507059e+37
    %v184 = vand.u32 %v172, 2147483648
    %v185 = vor.u32 1.1754944e-38, %v184
    %v186 = vsel %vm183, %v185, %v181
    %s187 = vtos %v186
    %s188 = smul.f32 2.0, %s187
    %v189 = vstv %s188
    %v190 = vmul.f32 %v43, %v189
    %v191 = vmul.f32 %v44, %v189
    %v192 = vmul.f32 %v45, %v189
    %v193 = vmul.f32 %v46, %v189
    %194 = vst [vmem:[#allocation7] sm:$0xff] %v190
    %195 = vst [vmem:[#allocation7 + $0x8] sm:$0xff] %v191
    %196 = vst [vmem:[#allocation7 + $0x10] sm:$0xff] %v192
    %197 = vst [vmem:[#allocation7 + $0x18] sm:$0xff] %v193
    %v198 = vmul.f32 %v47, %v189
    %v199 = vmul.f32 %v48, %v189
    %v200 = vmul.f32 %v49, %v189
    %v201 = vmul.f32 %v50, %v189
    %202 = vst [vmem:[#allocation8] sm:$0xff] %v198
    %203 = vst [vmem:[#allocation8 + $0x8] sm:$0xff] %v199
    %204 = vst [vmem:[#allocation8 + $0x10] sm:$0xff] %v200
    %205 = vst [vmem:[#allocation8 + $0x18] sm:$0xff] %v201
    // Predicated region
    $region18: #{tpu_custom_call.1} parent=1 // pred_check
      _
    $region19: #{tpu_custom_call.1} parent=1 // pred_check_branch
      %207 = sbr.rel (0) target = $region21
    $region20: #{tpu_custom_call.1} parent=1 // pred_region
      %209 = vsyncadd [#allocation4], 0
      %s211 = sshll.u32 [#allocation7], 4
      %s212 = int_to_ptr.vmem [resolvable:$true] %s211
      %s213 = sshll.u32 %s2, 4
      %s214 = int_to_ptr.hbm [resolvable:$true] %s213
      %216 = dma.vmem_to_hbm [thread:$0]  %s212, 512, %s214, [#allocation4]
    $region21: #{tpu_custom_call.1} parent=1 // pred_fallthru
      _
    // Predicated region
    $region22: #{tpu_custom_call.1} parent=1 // pred_check
      _
    $region23: #{tpu_custom_call.1} parent=1 // pred_check_branch
      %218 = sbr.rel (0) target = $region25
    $region24: #{tpu_custom_call.1} parent=1 // pred_region
      %220 = vsyncadd [#allocation9], 0
      %s222 = sshll.u32 [#allocation8], 4
      %s223 = int_to_ptr.vmem [resolvable:$true] %s222
      %s224 = sshll.u32 %s3, 4
      %s225 = int_to_ptr.hbm [resolvable:$true] %s224
      %227 = dma.vmem_to_hbm [thread:$0]  %s223, 512, %s225, [#allocation9]
    $region25: #{tpu_custom_call.1} parent=1 // pred_fallthru
      _
    // Predicated region
    $region26: #{tpu_custom_call.1} parent=1 // pred_check
      _
    $region27: #{tpu_custom_call.1} parent=1 // pred_check_branch
      %229 = sbr.rel (0) target = $region29
    $region28: #{tpu_custom_call.1} parent=1 // pred_region
      %231 = dma.done [#allocation4], 512
    $region29: #{tpu_custom_call.1} parent=1 // pred_fallthru
      _
    // Predicated region
    $region30: #{tpu_custom_call.1} parent=1 // pred_check
      _
    $region31: #{tpu_custom_call.1} parent=1 // pred_check_branch
      %233 = sbr.rel (0) target = $region33
    $region32: #{tpu_custom_call.1} parent=1 // pred_region
      %235 = dma.done [#allocation9], 512
    $region33: #{tpu_custom_call.1} parent=1 // pred_fallthru
      _
    %236 = vsyncpa [#allocation3], 1
    %237 = vsyncpa [#allocation6], 1
    %238 = vsyncpa [#allocation4], 1
    %239 = vsyncpa [#allocation9], 1

</llo_original>
